<compile_context>
chip_gen: v7x
topology: tpu7x:2x2x1
jax: 0.10.0
libtpu: 0.0.40
codegen_flags: <defaults>
</compile_context>

<pallas_src>
import math

import jax
import jax.numpy as jnp
from jax.experimental import pallas as pl
from jax.experimental.pallas import tpu as pltpu

EMBED_DIM = 64
N_HEADS = 2
HEAD_DIM = EMBED_DIM // N_HEADS  # 32

# MXU operand dtype, cast in the wrapper so the HBM->VMEM DMA itself is half-size.
# bf16 is the right default on v6e/v7x (2x MXU rate) and acceptable on v5e too, since
# all softmax math stays f32; flip to jnp.float32 if exact parity is required.
COMPUTE_DTYPE = jnp.bfloat16


def mha_kernel(qkv_ref, w_qkv_ref, wo_b_ref, o_ref):
    # qkv block: (bblk, S, 3E); weights resident in VMEM; output block: (bblk, S, E).
    bblk, S, F = qkv_ref.shape            # F = 3 * EMBED_DIM
    E, D, H = EMBED_DIM, HEAD_DIM, N_HEADS
    R = bblk * S
    cd = qkv_ref.dtype                    # MXU operand dtype (bf16 recommended)

    # Leading-dim collapse only (S == 8 == sublane tile, so this reshape is free).
    x = qkv_ref[...].reshape(R, F)

    # Fused per-head Q/K/V projections: ONE (R,192)@(192,192) dot, f32 accumulation.
    # The weight is block-diagonal per tensor and per head, pre-transposed for x @ W,
    # with the 1/sqrt(D) attention scale folded into the Q blocks.
    proj = jnp.dot(x, w_qkv_ref[...], preferred_element_type=jnp.float32)  # (R, 3E) f32

    wo_t = wo_b_ref[:E, :]                          # (E, E) = Wo.T  (sublane slice, cheap)
    bias = wo_b_ref[E:, :].astype(jnp.float32)      # (1, E)

    head_outs = []
    for h in range(H):                              # static loop, H == 2
        lo = h * D
        qh = proj[:, lo:lo + D].reshape(bblk, S, D).astype(cd)
        kh = proj[:, E + lo:E + lo + D].reshape(bblk, S, D).astype(cd)
        vh = proj[:, 2 * E + lo:2 * E + lo + D].reshape(bblk, S, D).astype(cd)

        # scores = (q / sqrt(D)) @ k^T as a dot_general (no materialized transpose).
        s = jnp.einsum("bqd,bkd->bqk", qh, kh, preferred_element_type=jnp.float32)
        s = s - jnp.max(s, axis=-1, keepdims=True)  # stable softmax, f32 throughout
        p = jnp.exp(s)
        p = p / jnp.sum(p, axis=-1, keepdims=True)  # exact normalizer
        oh = jnp.einsum("bqk,bkd->bqd", p.astype(cd), vh,
                        preferred_element_type=jnp.float32)       # (bblk, S, D) f32
        head_outs.append(oh.reshape(R, D))

    # Concatenate heads along lanes -> single K = 64 output-projection dot, then bias.
    concat = jnp.concatenate(head_outs, axis=-1).astype(cd)        # (R, E)
    out = jnp.dot(concat, wo_t, preferred_element_type=jnp.float32) + bias
    o_ref[...] = out.reshape(bblk, S, E).astype(o_ref.dtype)


def _pick_block_batch(B, S):
    """Batch rows per grid step.  Prefer ONE step (the grid is a strictly serial loop on
    single-TC v5e/v6e, so extra steps are pure per-step overhead); split in two only when
    each half still carries >= 256 rows so v7x's dual TensorCores both get real work."""
    if B % 2 == 0 and (B // 2) * S >= 256:
        return B // 2
    return B
    # TODO(synk): add a VMEM-driven shrink (multiples of 8) once B*S grows enough that a
    # single bf16 (bblk, S, 3E) block no longer fits comfortably under the vmem limit.


@jax.jit
def multi_head_attention(key, query, value, wq, wk, wv, wo, bo):
    B, S, E = key.shape
    assert E == EMBED_DIM
    assert query.shape == key.shape == value.shape, \
        "kernel assumes self-attention shapes (S_query == S_kv)"
    D = HEAD_DIM
    scale = 1.0 / math.sqrt(D)

    # ---- wrapper-side layout plumbing (all relayout work happens here, not in-kernel) --
    # Packed lane-dense input: (B, S, 3E) with last dim 192, cast to the MXU dtype so the
    # DMA itself is half-size.
    qkv = jnp.concatenate([query, key, value], axis=-1).astype(COMPUTE_DTYPE)

    # Fused block-diagonal projection weight (3E, 3E), pre-transposed for y = x @ W, with
    # the attention scale folded into the query blocks.
    eye = jnp.eye(N_HEADS, dtype=jnp.float32)
    wq_blk = jnp.kron(eye, wq.T.astype(jnp.float32)) * scale      # (E, E)
    wk_blk = jnp.kron(eye, wk.T.astype(jnp.float32))              # (E, E)
    wv_blk = jnp.kron(eye, wv.T.astype(jnp.float32))              # (E, E)
    w_qkv = jnp.zeros((3 * E, 3 * E), jnp.float32)
    w_qkv = w_qkv.at[0:E, 0:E].set(wq_blk)
    w_qkv = w_qkv.at[E:2 * E, E:2 * E].set(wk_blk)
    w_qkv = w_qkv.at[2 * E:, 2 * E:].set(wv_blk)
    w_qkv = w_qkv.astype(COMPUTE_DTYPE)

    # Output projection weight and bias packed into ONE operand: rows 0..E-1 = Wo.T,
    # row E = bias (fewer DMA descriptors / double-buffer allocations).
    wo_b = jnp.concatenate(
        [wo.T.astype(jnp.float32), bo.reshape(1, E).astype(jnp.float32)], axis=0
    ).astype(COMPUTE_DTYPE)                                        # (E + 1, E)

    bblk = _pick_block_batch(B, S)
    grid = (B // bblk,)

    x_spec = pl.BlockSpec((bblk, S, 3 * E), lambda b: (b, 0, 0))
    wqkv_spec = pl.BlockSpec((3 * E, 3 * E), lambda b: (0, 0))
    wob_spec = pl.BlockSpec((E + 1, E), lambda b: (0, 0))
    o_spec = pl.BlockSpec((bblk, S, E), lambda b: (b, 0, 0))

    return pl.pallas_call(
        mha_kernel,
        out_shape=jax.ShapeDtypeStruct((B, S, E), query.dtype),
        grid_spec=pltpu.PrefetchScalarGridSpec(
            num_scalar_prefetch=0,
            grid=grid,
            in_specs=[x_spec, wqkv_spec, wob_spec],
            out_specs=o_spec,
        ),
        compiler_params=pltpu.CompilerParams(
            dimension_semantics=("parallel",),
            vmem_limit_bytes=32 * 1024 * 1024,
        ),
    )(qkv, w_qkv, wo_b)


def mha_reference(key, query, value, wq, wk, wv, wo, bo):
    """Pure-JAX reference mirroring the PyTorch module exactly (f32)."""
    B, S, E = key.shape
    D = HEAD_DIM
    k = key.reshape(B, S, N_HEADS, D)
    q = query.reshape(B, S, N_HEADS, D)
    v = value.reshape(B, S, N_HEADS, D)
    k = jnp.einsum("bshd,ed->bshe", k, wk)
    q = jnp.einsum("bshd,ed->bshe", q, wq)
    v = jnp.einsum("bshd,ed->bshe", v, wv)
    q = q.transpose(0, 2, 1, 3)  # (B, H, S, D)
    k = k.transpose(0, 2, 1, 3)
    v = v.transpose(0, 2, 1, 3)
    prod = jnp.einsum("bhqd,bhkd->bhqk", q, k) / math.sqrt(D)
    scores = jax.nn.softmax(prod, axis=-1)
    out = jnp.einsum("bhqk,bhkd->bhqd", scores, v)
    concat = out.transpose(0, 2, 1, 3).reshape(B, S, E)
    return concat @ wo.T + bo


if __name__ == "__main__":
    rng = jax.random.PRNGKey(0)
    kk, kq, kv, kwq, kwk, kwv, kwo, kbo = jax.random.split(rng, 8)

    B, S, E, D = 2, 8, EMBED_DIM, HEAD_DIM

    key_in = jax.random.normal(kk, (B, S, E), dtype=jnp.float32)
    query_in = jax.random.normal(kq, (B, S, E), dtype=jnp.float32)
    value_in = jax.random.normal(kv, (B, S, E), dtype=jnp.float32)

    # Deterministic parameter init (PyTorch Linear-style uniform bounds).
    bound_d = 1.0 / math.sqrt(D)
    bound_e = 1.0 / math.sqrt(E)
    wq = jax.random.uniform(kwq, (D, D), jnp.float32, -bound_d, bound_d)
    wk = jax.random.uniform(kwk, (D, D), jnp.float32, -bound_d, bound_d)
    wv = jax.random.uniform(kwv, (D, D), jnp.float32, -bound_d, bound_d)
    wo = jax.random.uniform(kwo, (E, E), jnp.float32, -bound_e, bound_e)
    bo = jax.random.uniform(kbo, (E,), jnp.float32, -bound_e, bound_e)

    out = multi_head_attention(key_in, query_in, value_in, wq, wk, wv, wo, bo)
    out = jax.block_until_ready(out)

    ref = mha_reference(key_in, query_in, value_in, wq, wk, wv, wo, bo)
    assert out.shape == (B, S, E)
    max_err = float(jnp.max(jnp.abs(out - ref)))
    # bf16 MXU operands (f32 accumulation, f32 softmax, exact normalizer) vs the f32
    # PyTorch-mirroring reference: error budget O(1e-2) absolute.
    assert jnp.allclose(out, ref, atol=2e-2, rtol=2e-2), \
        f"mismatch vs reference (max abs err {max_err:.2e})"

    print("KERNEL_OK")
</pallas_src>

<mosaic_0001>
module attributes {stable_mosaic.version = 11 : i64} {
  func.func @mha_kernel(%arg0: i32, %arg1: memref<2x8x192xbf16, #tpu.memory_space<vmem>>, %arg2: memref<192x192xbf16, #tpu.memory_space<vmem>>, %arg3: memref<65x64xbf16, #tpu.memory_space<vmem>>, %arg4: memref<2x8x64xf32, #tpu.memory_space<vmem>>) attributes {dimension_semantics = [#tpu.dimension_semantics<parallel>], iteration_bounds = array<i64: 1>, scalar_prefetch = 0 : i64, scratch_operands = 0 : i64, tpu.core_type = #tpu.core_type<tc>, window_params = [{transform_indices = @transform_0, window_bounds = array<i64: 2, 8, 192>}, {pipeline_mode = #tpu.pipeline_mode<synchronous>, transform_indices = @transform_1, window_bounds = array<i64: 192, 192>}, {pipeline_mode = #tpu.pipeline_mode<synchronous>, transform_indices = @transform_2, window_bounds = array<i64: 65, 64>}, {transform_indices = @transform_3, window_bounds = array<i64: 2, 8, 64>}]} {
    %c0 = arith.constant 0 : index
    %c0_0 = arith.constant 0 : index
    %c0_1 = arith.constant 0 : index
    %0 = vector.load %arg1[%c0, %c0_0, %c0_1] : memref<2x8x192xbf16, #tpu.memory_space<vmem>>, vector<2x8x192xbf16>
    %1 = vector.shape_cast %0 : vector<2x8x192xbf16> to vector<16x192xbf16>
    %c0_2 = arith.constant 0 : index
    %c0_3 = arith.constant 0 : index
    %2 = vector.load %arg2[%c0_2, %c0_3] : memref<192x192xbf16, #tpu.memory_space<vmem>>, vector<192x192xbf16>
    %cst = arith.constant dense<0.000000e+00> : vector<16x192xf32>
    %3 = tpu.matmul %1, %2, %cst {dimension_numbers = #tpu.dot_dimension_numbers<[1], [0], [0], [1], [0, 0, 1, 1], [], []>} : vector<16x192xbf16>, vector<192x192xbf16>, vector<16x192xf32> -> vector<16x192xf32>
    %c0_4 = arith.constant 0 : index
    %c0_5 = arith.constant 0 : index
    %4 = vector.load %arg3[%c0_4, %c0_5] : memref<65x64xbf16, #tpu.memory_space<vmem>>, vector<64x64xbf16>
    %c64 = arith.constant 64 : index
    %c0_6 = arith.constant 0 : index
    %5 = vector.load %arg3[%c64, %c0_6] : memref<65x64xbf16, #tpu.memory_space<vmem>>, vector<1x64xbf16>
    %6 = arith.extf %5 : vector<1x64xbf16> to vector<1x64xf32>
    %7 = vector.extract_strided_slice %3 {offsets = [0, 0], sizes = [16, 32], strides = [1, 1]} : vector<16x192xf32> to vector<16x32xf32>
    %8 = vector.shape_cast %7 : vector<16x32xf32> to vector<2x8x32xf32>
    %9 = arith.truncf %8 : vector<2x8x32xf32> to vector<2x8x32xbf16>
    %10 = vector.extract_strided_slice %3 {offsets = [0, 64], sizes = [16, 32], strides = [1, 1]} : vector<16x192xf32> to vector<16x32xf32>
    %11 = vector.shape_cast %10 : vector<16x32xf32> to vector<2x8x32xf32>
    %12 = arith.truncf %11 : vector<2x8x32xf32> to vector<2x8x32xbf16>
    %13 = vector.extract_strided_slice %3 {offsets = [0, 128], sizes = [16, 32], strides = [1, 1]} : vector<16x192xf32> to vector<16x32xf32>
    %14 = vector.shape_cast %13 : vector<16x32xf32> to vector<2x8x32xf32>
    %15 = arith.truncf %14 : vector<2x8x32xf32> to vector<2x8x32xbf16>
    "tpu.trace_start"() <{level = 10 : i32, message = "bqd,bkd->bqk"}> : () -> ()
    %cst_7 = arith.constant dense<0.000000e+00> : vector<2x8x8xf32>
    %16 = tpu.matmul %9, %12, %cst_7 {dimension_numbers = #tpu.dot_dimension_numbers<[2], [2], [1], [1], [0, 0, 0, 1, 1, 1], [0], [0]>} : vector<2x8x32xbf16>, vector<2x8x32xbf16>, vector<2x8x8xf32> -> vector<2x8x8xf32>
    "tpu.trace_stop"() : () -> ()
    %cst_8 = arith.constant dense<0xFF800000> : vector<2x8xf32>
    %17 = vector.multi_reduction <maximumf>, %16, %cst_8 [2] : vector<2x8x8xf32> to vector<2x8xf32>
    %18 = vector.shape_cast %17 : vector<2x8xf32> to vector<2x8x1xf32>
    %19 = vector.broadcast %18 : vector<2x8x1xf32> to vector<2x8x8xf32>
    %20 = arith.subf %16, %19 : vector<2x8x8xf32>
    %21 = math.exp %20 : vector<2x8x8xf32>
    %cst_9 = arith.constant dense<0.000000e+00> : vector<2x8xf32>
    %22 = vector.multi_reduction <add>, %21, %cst_9 [2] : vector<2x8x8xf32> to vector<2x8xf32>
    %23 = vector.shape_cast %22 : vector<2x8xf32> to vector<2x8x1xf32>
    %24 = vector.broadcast %23 : vector<2x8x1xf32> to vector<2x8x8xf32>
    %25 = arith.divf %21, %24 : vector<2x8x8xf32>
    %26 = arith.truncf %25 : vector<2x8x8xf32> to vector<2x8x8xbf16>
    "tpu.trace_start"() <{level = 10 : i32, message = "bqk,bkd->bqd"}> : () -> ()
    %cst_10 = arith.constant dense<0.000000e+00> : vector<2x8x32xf32>
    %27 = tpu.matmul %26, %15, %cst_10 {dimension_numbers = #tpu.dot_dimension_numbers<[2], [1], [1], [2], [0, 0, 0, 1, 1, 2], [0], [0]>} : vector<2x8x8xbf16>, vector<2x8x32xbf16>, vector<2x8x32xf32> -> vector<2x8x32xf32>
    "tpu.trace_stop"() : () -> ()
    %28 = vector.shape_cast %27 : vector<2x8x32xf32> to vector<16x32xf32>
    %29 = vector.extract_strided_slice %3 {offsets = [0, 32], sizes = [16, 32], strides = [1, 1]} : vector<16x192xf32> to vector<16x32xf32>
    %30 = vector.shape_cast %29 : vector<16x32xf32> to vector<2x8x32xf32>
    %31 = arith.truncf %30 : vector<2x8x32xf32> to vector<2x8x32xbf16>
    %32 = vector.extract_strided_slice %3 {offsets = [0, 96], sizes = [16, 32], strides = [1, 1]} : vector<16x192xf32> to vector<16x32xf32>
    %33 = vector.shape_cast %32 : vector<16x32xf32> to vector<2x8x32xf32>
    %34 = arith.truncf %33 : vector<2x8x32xf32> to vector<2x8x32xbf16>
    %35 = vector.extract_strided_slice %3 {offsets = [0, 160], sizes = [16, 32], strides = [1, 1]} : vector<16x192xf32> to vector<16x32xf32>
    %36 = vector.shape_cast %35 : vector<16x32xf32> to vector<2x8x32xf32>
    %37 = arith.truncf %36 : vector<2x8x32xf32> to vector<2x8x32xbf16>
    "tpu.trace_start"() <{level = 10 : i32, message = "bqd,bkd->bqk"}> : () -> ()
    %cst_11 = arith.constant dense<0.000000e+00> : vector<2x8x8xf32>
    %38 = tpu.matmul %31, %34, %cst_11 {dimension_numbers = #tpu.dot_dimension_numbers<[2], [2], [1], [1], [0, 0, 0, 1, 1, 1], [0], [0]>} : vector<2x8x32xbf16>, vector<2x8x32xbf16>, vector<2x8x8xf32> -> vector<2x8x8xf32>
    "tpu.trace_stop"() : () -> ()
    %cst_12 = arith.constant dense<0xFF800000> : vector<2x8xf32>
    %39 = vector.multi_reduction <maximumf>, %38, %cst_12 [2] : vector<2x8x8xf32> to vector<2x8xf32>
    %40 = vector.shape_cast %39 : vector<2x8xf32> to vector<2x8x1xf32>
    %41 = vector.broadcast %40 : vector<2x8x1xf32> to vector<2x8x8xf32>
    %42 = arith.subf %38, %41 : vector<2x8x8xf32>
    %43 = math.exp %42 : vector<2x8x8xf32>
    %cst_13 = arith.constant dense<0.000000e+00> : vector<2x8xf32>
    %44 = vector.multi_reduction <add>, %43, %cst_13 [2] : vector<2x8x8xf32> to vector<2x8xf32>
    %45 = vector.shape_cast %44 : vector<2x8xf32> to vector<2x8x1xf32>
    %46 = vector.broadcast %45 : vector<2x8x1xf32> to vector<2x8x8xf32>
    %47 = arith.divf %43, %46 : vector<2x8x8xf32>
    %48 = arith.truncf %47 : vector<2x8x8xf32> to vector<2x8x8xbf16>
    "tpu.trace_start"() <{level = 10 : i32, message = "bqk,bkd->bqd"}> : () -> ()
    %cst_14 = arith.constant dense<0.000000e+00> : vector<2x8x32xf32>
    %49 = tpu.matmul %48, %37, %cst_14 {dimension_numbers = #tpu.dot_dimension_numbers<[2], [1], [1], [2], [0, 0, 0, 1, 1, 2], [0], [0]>} : vector<2x8x8xbf16>, vector<2x8x32xbf16>, vector<2x8x32xf32> -> vector<2x8x32xf32>
    "tpu.trace_stop"() : () -> ()
    %50 = vector.shape_cast %49 : vector<2x8x32xf32> to vector<16x32xf32>
    %51 = tpu.concatenate %28, %50 in 1 : vector<16x32xf32>, vector<16x32xf32> -> vector<16x64xf32>
    %52 = arith.truncf %51 : vector<16x64xf32> to vector<16x64xbf16>
    %cst_15 = arith.constant dense<0.000000e+00> : vector<16x64xf32>
    %53 = tpu.matmul %52, %4, %cst_15 {dimension_numbers = #tpu.dot_dimension_numbers<[1], [0], [0], [1], [0, 0, 1, 1], [], []>} : vector<16x64xbf16>, vector<64x64xbf16>, vector<16x64xf32> -> vector<16x64xf32>
    %54 = vector.broadcast %6 : vector<1x64xf32> to vector<16x64xf32>
    %55 = arith.addf %53, %54 : vector<16x64xf32>
    %56 = vector.shape_cast %55 : vector<16x64xf32> to vector<2x8x64xf32>
    %c0_16 = arith.constant 0 : index
    %c0_17 = arith.constant 0 : index
    %c0_18 = arith.constant 0 : index
    %57 = vector.load %arg4[%c0_16, %c0_17, %c0_18] : memref<2x8x64xf32, #tpu.memory_space<vmem>>, vector<2x8x64xf32>
    tpu.vector_store %arg4[%c0_16, %c0_17, %c0_18], %56 {strides = array<i32>} : memref<2x8x64xf32, #tpu.memory_space<vmem>>, vector<2x8x64xf32>,
    return
  }
  func.func @transform_0(%arg0: i32) -> (i32, i32, i32) {
    %c0_i32 = arith.constant 0 : i32
    %c0_i32_0 = arith.constant 0 : i32
    %c0_i32_1 = arith.constant 0 : i32
    return %arg0, %c0_i32, %c0_i32_0 : i32, i32, i32
  }
  func.func @transform_1(%arg0: i32) -> (i32, i32) {
    %c0_i32 = arith.constant 0 : i32
    %c0_i32_0 = arith.constant 0 : i32
    %c0_i32_1 = arith.constant 0 : i32
    return %c0_i32, %c0_i32_0 : i32, i32
  }
  func.func @transform_2(%arg0: i32) -> (i32, i32) {
    %c0_i32 = arith.constant 0 : i32
    %c0_i32_0 = arith.constant 0 : i32
    %c0_i32_1 = arith.constant 0 : i32
    return %c0_i32, %c0_i32_0 : i32, i32
  }
  func.func @transform_3(%arg0: i32) -> (i32, i32, i32) {
    %c0_i32 = arith.constant 0 : i32
    %c0_i32_0 = arith.constant 0 : i32
    %c0_i32_1 = arith.constant 0 : i32
    return %arg0, %c0_i32, %c0_i32_0 : i32, i32, i32
  }
}

</mosaic_0001>

<llo_original>
// kernel: multi_head_attention.1
$region0: #{multi_head_attention.1}
  #allocation0 [shape = 'u32[]', space=smem, size = 0x4, offset = 0x4, fixed_abs, tag = 'smem constant byte address 0x4 - core index']
  #allocation1 [shape = 'u32[144,128]{1,0:T(1,128)}', space=vmem, size = 0x12000, scoped, tag = 'internal scratch']
  %s0 = inlined_call_operand.vmem [shape: bf16[2,8,192], index: 0, kind: input, shape index: {}]
  %s1 = inlined_call_operand.vmem [shape: bf16[192,192], index: 1, kind: input, shape index: {}]
  %s2 = inlined_call_operand.vmem [shape: bf16[65,64], index: 2, kind: input, shape index: {}]
  %s3 = inlined_call_operand.hbm [shape: f32[2,8,64], index: 3, kind: output, shape index: {}]
  %s4 = sld [smem:[#allocation0]]
  $region22: #{multi_head_attention.1} parent=0
    _
  %s6 = ssub.s32 1, %s4
  %s7 = scalar_select 0, %s6, %s4
  $region1: #{multi_head_attention.1} parent=0
    #allocation2 [shape = 'u8[8192]{0}', space=vmem, size = 0x2000, scoped, tag = 'output window, operand 0, single buffered']
    #allocation3 [shape = 's32[1]{0}', space=sflag, size = 0x4, scoped, tag = 'scoped memory for multi_head_attention.1']
    %8 = vsyncpa [#allocation3], 0
    // Predicated region
    $region2: #{multi_head_attention.1} parent=1 // pred_check
      _
    $region3: #{multi_head_attention.1} parent=1 // pred_check_branch
      %10 = sbr.rel (0) target = $region5
    $region4: #{multi_head_attention.1} parent=1 // pred_region
      _
    $region5: #{multi_head_attention.1} parent=1 // pred_fallthru
      _
    // Predicated region
    $region6: #{multi_head_attention.1} parent=1 // pred_check
      _
    $region7: #{multi_head_attention.1} parent=1 // pred_check_branch
      %12 = sbr.rel (0) target = $region9
    $region8: #{multi_head_attention.1} parent=1 // pred_region
      _
    $region9: #{multi_head_attention.1} parent=1 // pred_fallthru
      _
    // Predicated region
    $region10: #{multi_head_attention.1} parent=1 // pred_check
      _
    $region11: #{multi_head_attention.1} parent=1 // pred_check_branch
      %14 = sbr.rel (0) target = $region13
    $region12: #{multi_head_attention.1} parent=1 // pred_region
      _
    $region13: #{multi_head_attention.1} parent=1 // pred_fallthru
      _
    %v16 = vld [vmem:[%s0] sm:$0xff]
    %v17 = vld [vmem:[%s0 + $0x8] sm:$0xff]
    %v18 = vld [vmem:[%s1] sm:$0xff]
    %v19 = vld [vmem:[%s1 + $0x8] sm:$0xff]
    %v20 = vld [vmem:[%s1 + $0x10] sm:$0xff]
    %v21 = vld [vmem:[%s1 + $0x18] sm:$0xff]
    %v22 = vld [vmem:[%s1 + $0x20] sm:$0xff]
    %v23 = vld [vmem:[%s1 + $0x28] sm:$0xff]
    %v24 = vld [vmem:[%s1 + $0x30] sm:$0xff]
    %v25 = vld [vmem:[%s1 + $0x38] sm:$0xff]
    %v26 = vld [vmem:[%s1 + $0x40] sm:$0xff]
    %v27 = vld [vmem:[%s1 + $0x48] sm:$0xff]
    %v28 = vld [vmem:[%s1 + $0x50] sm:$0xff]
    %v29 = vld [vmem:[%s1 + $0x58] sm:$0xff]
    %v30 = vld [vmem:[%s1 + $0x60] sm:$0xff]
    %v31 = vld [vmem:[%s1 + $0x68] sm:$0xff]
    %v32 = vld [vmem:[%s1 + $0x70] sm:$0xff]
    %v33 = vld [vmem:[%s1 + $0x78] sm:$0xff]
    %v34 = vld [vmem:[%s1 + $0x80] sm:$0xff]
    %v35 = vld [vmem:[%s1 + $0x88] sm:$0xff]
    %v36 = vld [vmem:[%s1 + $0x90] sm:$0xff]
    %v37 = vld [vmem:[%s1 + $0x98] sm:$0xff]
    %v38 = vld [vmem:[%s1 + $0xa0] sm:$0xff]
    %v39 = vld [vmem:[%s1 + $0xa8] sm:$0xff]
    %v40 = vld [vmem:[%s1 + $0xb0] sm:$0xff]
    %v41 = vld [vmem:[%s1 + $0xb8] sm:$0xff]
    %v44 = vunpack.c.l.b16 %v16
    %v45 = vunpack.c.h.b16 %v16
    %v46 = vunpack.c.l.b16 %v17
    %v47 = vunpack.c.h.b16 %v17
    %v48 = vpack.c.b16 %v46, %v44
    %v49 = vpack.c.b16 %v47, %v45
    %v75 = vunpack.c.l.b16 %v18
    %v76 = vunpack.c.h.b16 %v18
    %v77 = vunpack.c.l.b16 %v19
    %v78 = vunpack.c.h.b16 %v19
    %v79 = vunpack.c.l.b16 %v20
    %v80 = vunpack.c.h.b16 %v20
    %v81 = vunpack.c.l.b16 %v21
    %v82 = vunpack.c.h.b16 %v21
    %v83 = vunpack.c.l.b16 %v22
    %v84 = vunpack.c.h.b16 %v22
    %v85 = vunpack.c.l.b16 %v23
    %v86 = vunpack.c.h.b16 %v23
    %v87 = vunpack.c.l.b16 %v24
    %v88 = vunpack.c.h.b16 %v24
    %v89 = vunpack.c.l.b16 %v25
    %v90 = vunpack.c.h.b16 %v25
    %v91 = vunpack.c.l.b16 %v26
    %v92 = vunpack.c.h.b16 %v26
    %v93 = vunpack.c.l.b16 %v27
    %v94 = vunpack.c.h.b16 %v27
    %v95 = vunpack.c.l.b16 %v28
    %v96 = vunpack.c.h.b16 %v28
    %v97 = vunpack.c.l.b16 %v29
    %v98 = vunpack.c.h.b16 %v29
    %v99 = vunpack.c.l.b16 %v30
    %v100 = vunpack.c.h.b16 %v30
    %v101 = vunpack.c.l.b16 %v31
    %v102 = vunpack.c.h.b16 %v31
    %v103 = vunpack.c.l.b16 %v32
    %v104 = vunpack.c.h.b16 %v32
    %v105 = vunpack.c.l.b16 %v33
    %v106 = vunpack.c.h.b16 %v33
    %v107 = vunpack.c.l.b16 %v34
    %v108 = vunpack.c.h.b16 %v34
    %v109 = vunpack.c.l.b16 %v35
    %v110 = vunpack.c.h.b16 %v35
    %v111 = vunpack.c.l.b16 %v36
    %v112 = vunpack.c.h.b16 %v36
    %v113 = vunpack.c.l.b16 %v37
    %v114 = vunpack.c.h.b16 %v37
    %v115 = vunpack.c.l.b16 %v38
    %v116 = vunpack.c.h.b16 %v38
    %v117 = vunpack.c.l.b16 %v39
    %v118 = vunpack.c.h.b16 %v39
    %v119 = vunpack.c.l.b16 %v40
    %v120 = vunpack.c.h.b16 %v40
    %v121 = vunpack.c.l.b16 %v41
    %v122 = vunpack.c.h.b16 %v41
    %v123 = vpack.c.b16 %v77, %v75
    %v124 = vpack.c.b16 %v78, %v76
    %v125 = vpack.c.b16 %v81, %v79
    %v126 = vpack.c.b16 %v82, %v80
    %v127 = vpack.c.b16 %v85, %v83
    %v128 = vpack.c.b16 %v86, %v84
    %v129 = vpack.c.b16 %v89, %v87
    %v130 = vpack.c.b16 %v90, %v88
    %v131 = vpack.c.b16 %v93, %v91
    %v132 = vpack.c.b16 %v94, %v92
    %v133 = vpack.c.b16 %v97, %v95
    %v134 = vpack.c.b16 %v98, %v96
    %v135 = vpack.c.b16 %v101, %v99
    %v136 = vpack.c.b16 %v102, %v100
    %v137 = vpack.c.b16 %v105, %v103
    %v138 = vpack.c.b16 %v106, %v104
    %v139 = vpack.c.b16 %v109, %v107
    %v140 = vpack.c.b16 %v110, %v108
    %v141 = vpack.c.b16 %v113, %v111
    %v142 = vpack.c.b16 %v114, %v112
    %v143 = vpack.c.b16 %v117, %v115
    %v144 = vpack.c.b16 %v118, %v116
    %v145 = vpack.c.b16 %v121, %v119
    %v146 = vpack.c.b16 %v122, %v120
    %vm171 = vcmask 523264
    %v173 = vsel %vm171, %v49, 0
    %175 = vmatprep.subr.bf16.mxu0 %v124
    %176 = vmatpush1.bf16.msra.mxu0 %v123
    %177 = vmatprep.subr.bf16.mxu0 %v126
    %178 = vmatpush1.bf16.msra.mxu0 %v125
    %179 = vmatprep.subr.bf16.mxu0 %v128
    %180 = vmatpush1.bf16.msra.mxu0 %v127
    %181 = vmatprep.subr.bf16.mxu0 %v130
    %182 = vmatpush1.bf16.msra.mxu0 %v129
    %183 = vmatprep.subr.bf16.mxu0 %v132
    %184 = vmatpush1.bf16.msra.mxu0 %v131
    %185 = vmatprep.subr.bf16.mxu0 %v134
    %186 = vmatpush1.bf16.msra.mxu0 %v133
    %187 = vmatprep.subr.bf16.mxu0 %v136
    %188 = vmatpush1.bf16.msra.mxu0 %v135
    %189 = vmatprep.subr.bf16.mxu0 %v138
    %190 = vmatpush1.bf16.msra.mxu0 %v137
    %191 = vmatprep.subr.bf16.mxu0 %v140
    %192 = vmatpush1.bf16.msra.mxu0 %v139
    %193 = vmatprep.subr.bf16.mxu0 %v142
    %194 = vmatpush1.bf16.msra.mxu0 %v141
    %195 = vmatprep.subr.bf16.mxu0 %v144
    %196 = vmatpush1.bf16.msra.mxu0 %v143
    %197 = vmatprep.subr.bf16.mxu0 %v146
    %198 = vmatpush1.bf16.msra.mxu0 %v145
    %199 = vmatprep.subr.bf16.mxu0 0
    %200 = vmatpush1.bf16.msra.mxu0 0
    %201 = vmatprep.subr.bf16.mxu0 0
    %202 = vmatpush1.bf16.msra.mxu0 0
    %203 = vmatprep.subr.bf16.mxu0 0
    %204 = vmatpush1.bf16.msra.mxu0 0
    %205 = vmatprep.subr.bf16.mxu0 0
    %206 = vmatpush1.bf16.msra.mxu0 0
    %207 = vmatprep.mubr.bf16.mxu0 %v173
    %208 = vmatmul.mubr.bf16.gmra.mrb[0].mxu0 %v48
    %v209 = vpop.f32.mrb[0].mxu0
    %v210 = vadd.f32 0.0, %v209
    %v211 = vpop.f32.mrb[0].mxu0
    %v212 = vadd.f32 0.0, %v211
    %v213 = vpop.f32.mrb[0].mxu0
    %v214 = vadd.f32 0.0, %v213
    %v215 = vpop.f32.mrb[0].mxu0
    %v216 = vadd.f32 0.0, %v215
    %217 = vdwg.mxu0
    %v218 = vld [vmem:[%s2] sm:$0xf]
    %v219 = vld [vmem:[%s2 + $0x4] sm:$0xf]
    %v220 = vld [vmem:[%s2 + $0x8] sm:$0xf]
    %v221 = vld [vmem:[%s2 + $0xc] sm:$0xf]
    %v222 = vld [vmem:[%s2 + $0x10] sm:$0xf]
    %v223 = vld [vmem:[%s2 + $0x14] sm:$0xf]
    %v224 = vld [vmem:[%s2 + $0x18] sm:$0xf]
    %v225 = vld [vmem:[%s2 + $0x1c] sm:$0xf]
    %v226 = vld [vmem:[%s2 + $0x20] sm:$0x1]
    %v227 = vunpack.c.l.bf16 %v226
    %v228 = vpack.c.bf16 %v210, %v210
    %v229 = vpack.c.bf16 %v214, %v214
    %v230 = vpack.c.bf16 %v212, %v212
    %v231 = vpack.c.bf16 %v216, %v216
    %233 = vrot.lane.b32.xlu0 %v228, 64
    %v234 = vpop.permute.xlu0 %233
    %vm235 = vcmask 261120
    %v237 = vsel %vm235, %v228, 0
    %v240 = vsel %vm235, %v234, 0
    %242 = vmatprep.subr.bf16.mxu0 0
    %243 = vmatpush1.bf16.xpose.msra.mxu0 %v240
    %244 = vmatprep.subr.bf16.mxu0 0
    %245 = vmatpush1.bf16.xpose.msra.mxu0 0
    %246 = vmatprep.subr.bf16.mxu0 0
    %247 = vmatpush1.bf16.xpose.msra.mxu0 0
    %248 = vmatprep.subr.bf16.mxu0 0
    %249 = vmatpush1.bf16.xpose.msra.mxu0 0
    %250 = vmatprep.subr.bf16.mxu0 0
    %251 = vmatpush1.bf16.xpose.msra.mxu0 0
    %252 = vmatprep.subr.bf16.mxu0 0
    %253 = vmatpush1.bf16.xpose.msra.mxu0 0
    %254 = vmatprep.subr.bf16.mxu0 0
    %255 = vmatpush1.bf16.xpose.msra.mxu0 0
    %256 = vmatprep.subr.bf16.mxu0 0
    %257 = vmatpush1.bf16.xpose.msra.mxu0 0
    %258 = vmatprep.subr.bf16.mxu0 0
    %259 = vmatpush1.bf16.xpose.msra.mxu0 0
    %260 = vmatprep.subr.bf16.mxu0 0
    %261 = vmatpush1.bf16.xpose.msra.mxu0 0
    %262 = vmatprep.subr.bf16.mxu0 0
    %263 = vmatpush1.bf16.xpose.msra.mxu0 0
    %264 = vmatprep.subr.bf16.mxu0 0
    %265 = vmatpush1.bf16.xpose.msra.mxu0 0
    %266 = vmatprep.subr.bf16.mxu0 0
    %267 = vmatpush1.bf16.xpose.msra.mxu0 0
    %268 = vmatprep.subr.bf16.mxu0 0
    %269 = vmatpush1.bf16.xpose.msra.mxu0 0
    %270 = vmatprep.subr.bf16.mxu0 0
    %271 = vmatpush1.bf16.xpose.msra.mxu0 0
    %272 = vmatprep.subr.bf16.mxu0 0
    %273 = vmatpush1.bf16.xpose.msra.mxu0 0
    %274 = vmatprep.mubr.bf16.mxu0 0
    %275 = vmatmul.mubr.bf16.gmra.mrb[0].mxu0 %v237
    %v276 = vpop.f32.mrb[0].mxu0
    %v277 = vadd.f32 0.0, %v276
    %v278 = vpop.f32.mrb[0].mxu0
    %v279 = vpop.f32.mrb[0].mxu0
    %v280 = vpop.f32.mrb[0].mxu0
    %281 = vdwg.mxu0
    %283 = vrot.lane.b32.xlu0 %v229, 64
    %v284 = vpop.permute.xlu0 %283
    %v286 = vsel %vm235, %v229, 0
    %v289 = vsel %vm235, %v284, 0
    %291 = vmatprep.subr.bf16.mxu0 0
    %292 = vmatpush1.bf16.xpose.msra.mxu0 %v289
    %293 = vmatprep.subr.bf16.mxu0 0
    %294 = vmatpush1.bf16.xpose.msra.mxu0 0
    %295 = vmatprep.subr.bf16.mxu0 0
    %296 = vmatpush1.bf16.xpose.msra.mxu0 0
    %297 = vmatprep.subr.bf16.mxu0 0
    %298 = vmatpush1.bf16.xpose.msra.mxu0 0
    %299 = vmatprep.subr.bf16.mxu0 0
    %300 = vmatpush1.bf16.xpose.msra.mxu0 0
    %301 = vmatprep.subr.bf16.mxu0 0
    %302 = vmatpush1.bf16.xpose.msra.mxu0 0
    %303 = vmatprep.subr.bf16.mxu0 0
    %304 = vmatpush1.bf16.xpose.msra.mxu0 0
    %305 = vmatprep.subr.bf16.mxu0 0
    %306 = vmatpush1.bf16.xpose.msra.mxu0 0
    %307 = vmatprep.subr.bf16.mxu0 0
    %308 = vmatpush1.bf16.xpose.msra.mxu0 0
    %309 = vmatprep.subr.bf16.mxu0 0
    %310 = vmatpush1.bf16.xpose.msra.mxu0 0
    %311 = vmatprep.subr.bf16.mxu0 0
    %312 = vmatpush1.bf16.xpose.msra.mxu0 0
    %313 = vmatprep.subr.bf16.mxu0 0
    %314 = vmatpush1.bf16.xpose.msra.mxu0 0
    %315 = vmatprep.subr.bf16.mxu0 0
    %316 = vmatpush1.bf16.xpose.msra.mxu0 0
    %317 = vmatprep.subr.bf16.mxu0 0
    %318 = vmatpush1.bf16.xpose.msra.mxu0 0
    %319 = vmatprep.subr.bf16.mxu0 0
    %320 = vmatpush1.bf16.xpose.msra.mxu0 0
    %321 = vmatprep.subr.bf16.mxu0 0
    %322 = vmatpush1.bf16.xpose.msra.mxu0 0
    %323 = vmatprep.mubr.bf16.mxu0 0
    %324 = vmatmul.mubr.bf16.gmra.mrb[0].mxu0 %v286
    %v325 = vpop.f32.mrb[0].mxu0
    %v326 = vadd.f32 0.0, %v325
    %v327 = vpop.f32.mrb[0].mxu0
    %v328 = vpop.f32.mrb[0].mxu0
    %v329 = vpop.f32.mrb[0].mxu0
    %330 = vdwg.mxu0
    %vm331 = vcmask 64512
    %v332 = vsel %vm331, %v277, -inf
    %333 = vmax.xlane.f32.xlu0 %v332
    %v334 = vpop.xlane.xlu0 %333
    %v335 = vsel %vm331, %v326, -inf
    %336 = vmax.xlane.f32.xlu0 %v335
    %v337 = vpop.xlane.xlu0 %336
    %v338 = vsub.f32 %v277, %v334
    %v339 = vsub.f32 %v326, %v337
    %v340 = vmul.f32 %v338, 1.442695
    %v341 = vpow.pop %v340
    %v342 = vmul.f32 %v339, 1.442695
    %v343 = vpow.pop %v342
    %v344 = vsel %vm331, %v341, 0.0
    %345 = vadd.xlane.f32.xlu0 %v344
    %v346 = vpop.xlane.xlu0 %345
    %v347 = vsel %vm331, %v343, 0.0
    %348 = vadd.xlane.f32.xlu0 %v347
    %v349 = vpop.xlane.xlu0 %348
    %v350 = vrcp.pop %v346
    %v351 = vmul.f32 %v341, %v350
    %v352 = vrcp.pop %v349
    %v353 = vmul.f32 %v343, %v352
    %v354 = vpack.c.bf16 %v351, %v351
    %v355 = vpack.c.bf16 %v353, %v353
    %v357 = vsel %vm331, %v354, 0
    %vm359 = vcmask 1043456
    %v361 = vsel %vm359, %v230, 0
    %363 = vmatprep.subr.bf16.mxu0 0
    %364 = vmatpush1.bf16.msra.mxu0 %v361
    %365 = vmatprep.subr.bf16.mxu0 0
    %366 = vmatpush1.bf16.msra.mxu0 0
    %367 = vmatprep.subr.bf16.mxu0 0
    %368 = vmatpush1.bf16.msra.mxu0 0
    %369 = vmatprep.subr.bf16.mxu0 0
    %370 = vmatpush1.bf16.msra.mxu0 0
    %371 = vmatprep.subr.bf16.mxu0 0
    %372 = vmatpush1.bf16.msra.mxu0 0
    %373 = vmatprep.subr.bf16.mxu0 0
    %374 = vmatpush1.bf16.msra.mxu0 0
    %375 = vmatprep.subr.bf16.mxu0 0
    %376 = vmatpush1.bf16.msra.mxu0 0
    %377 = vmatprep.subr.bf16.mxu0 0
    %378 = vmatpush1.bf16.msra.mxu0 0
    %379 = vmatprep.subr.bf16.mxu0 0
    %380 = vmatpush1.bf16.msra.mxu0 0
    %381 = vmatprep.subr.bf16.mxu0 0
    %382 = vmatpush1.bf16.msra.mxu0 0
    %383 = vmatprep.subr.bf16.mxu0 0
    %384 = vmatpush1.bf16.msra.mxu0 0
    %385 = vmatprep.subr.bf16.mxu0 0
    %386 = vmatpush1.bf16.msra.mxu0 0
    %387 = vmatprep.subr.bf16.mxu0 0
    %388 = vmatpush1.bf16.msra.mxu0 0
    %389 = vmatprep.subr.bf16.mxu0 0
    %390 = vmatpush1.bf16.msra.mxu0 0
    %391 = vmatprep.subr.bf16.mxu0 0
    %392 = vmatpush1.bf16.msra.mxu0 0
    %393 = vmatprep.subr.bf16.mxu0 0
    %394 = vmatpush1.bf16.msra.mxu0 0
    %395 = vmatprep.mubr.bf16.mxu0 0
    %396 = vmatmul.mubr.bf16.gmra.mrb[0].mxu0 %v357
    %v397 = vpop.f32.mrb[0].mxu0
    %v398 = vadd.f32 0.0, %v397
    %v399 = vpop.f32.mrb[0].mxu0
    %v400 = vpop.f32.mrb[0].mxu0
    %v401 = vpop.f32.mrb[0].mxu0
    %402 = vdwg.mxu0
    %v404 = vsel %vm331, %v355, 0
    %v407 = vsel %vm359, %v231, 0
    %409 = vmatprep.subr.bf16.mxu0 0
    %410 = vmatpush1.bf16.msra.mxu0 %v407
    %411 = vmatprep.subr.bf16.mxu0 0
    %412 = vmatpush1.bf16.msra.mxu0 0
    %413 = vmatprep.subr.bf16.mxu0 0
    %414 = vmatpush1.bf16.msra.mxu0 0
    %415 = vmatprep.subr.bf16.mxu0 0
    %416 = vmatpush1.bf16.msra.mxu0 0
    %417 = vmatprep.subr.bf16.mxu0 0
    %418 = vmatpush1.bf16.msra.mxu0 0
    %419 = vmatprep.subr.bf16.mxu0 0
    %420 = vmatpush1.bf16.msra.mxu0 0
    %421 = vmatprep.subr.bf16.mxu0 0
    %422 = vmatpush1.bf16.msra.mxu0 0
    %423 = vmatprep.subr.bf16.mxu0 0
    %424 = vmatpush1.bf16.msra.mxu0 0
    %425 = vmatprep.subr.bf16.mxu0 0
    %426 = vmatpush1.bf16.msra.mxu0 0
    %427 = vmatprep.subr.bf16.mxu0 0
    %428 = vmatpush1.bf16.msra.mxu0 0
    %429 = vmatprep.subr.bf16.mxu0 0
    %430 = vmatpush1.bf16.msra.mxu0 0
    %431 = vmatprep.subr.bf16.mxu0 0
    %432 = vmatpush1.bf16.msra.mxu0 0
    %433 = vmatprep.subr.bf16.mxu0 0
    %434 = vmatpush1.bf16.msra.mxu0 0
    %435 = vmatprep.subr.bf16.mxu0 0
    %436 = vmatpush1.bf16.msra.mxu0 0
    %437 = vmatprep.subr.bf16.mxu0 0
    %438 = vmatpush1.bf16.msra.mxu0 0
    %439 = vmatprep.subr.bf16.mxu0 0
    %440 = vmatpush1.bf16.msra.mxu0 0
    %441 = vmatprep.mubr.bf16.mxu0 0
    %442 = vmatmul.mubr.bf16.gmra.mrb[0].mxu0 %v404
    %v443 = vpop.f32.mrb[0].mxu0
    %v444 = vadd.f32 0.0, %v443
    %v445 = vpop.f32.mrb[0].mxu0
    %v446 = vpop.f32.mrb[0].mxu0
    %v447 = vpop.f32.mrb[0].mxu0
    %448 = vdwg.mxu0
    %449 = vrot.lane.b32.xlu0 %v228, 96
    %v450 = vpop.permute.xlu0 %449
    %451 = vrot.lane.b32.xlu0 %v228, 32
    %v452 = vpop.permute.xlu0 %451
    %v454 = vsel %vm235, %v450, 0
    %v457 = vsel %vm235, %v452, 0
    %459 = vmatprep.subr.bf16.mxu0 0
    %460 = vmatpush1.bf16.xpose.msra.mxu0 %v457
    %461 = vmatprep.subr.bf16.mxu0 0
    %462 = vmatpush1.bf16.xpose.msra.mxu0 0
    %463 = vmatprep.subr.bf16.mxu0 0
    %464 = vmatpush1.bf16.xpose.msra.mxu0 0
    %465 = vmatprep.subr.bf16.mxu0 0
    %466 = vmatpush1.bf16.xpose.msra.mxu0 0
    %467 = vmatprep.subr.bf16.mxu0 0
    %468 = vmatpush1.bf16.xpose.msra.mxu0 0
    %469 = vmatprep.subr.bf16.mxu0 0
    %470 = vmatpush1.bf16.xpose.msra.mxu0 0
    %471 = vmatprep.subr.bf16.mxu0 0
    %472 = vmatpush1.bf16.xpose.msra.mxu0 0
    %473 = vmatprep.subr.bf16.mxu0 0
    %474 = vmatpush1.bf16.xpose.msra.mxu0 0
    %475 = vmatprep.subr.bf16.mxu0 0
    %476 = vmatpush1.bf16.xpose.msra.mxu0 0
    %477 = vmatprep.subr.bf16.mxu0 0
    %478 = vmatpush1.bf16.xpose.msra.mxu0 0
    %479 = vmatprep.subr.bf16.mxu0 0
    %480 = vmatpush1.bf16.xpose.msra.mxu0 0
    %481 = vmatprep.subr.bf16.mxu0 0
    %482 = vmatpush1.bf16.xpose.msra.mxu0 0
    %483 = vmatprep.subr.bf16.mxu0 0
    %484 = vmatpush1.bf16.xpose.msra.mxu0 0
    %485 = vmatprep.subr.bf16.mxu0 0
    %486 = vmatpush1.bf16.xpose.msra.mxu0 0
    %487 = vmatprep.subr.bf16.mxu0 0
    %488 = vmatpush1.bf16.xpose.msra.mxu0 0
    %489 = vmatprep.subr.bf16.mxu0 0
    %490 = vmatpush1.bf16.xpose.msra.mxu0 0
    %491 = vmatprep.mubr.bf16.mxu0 0
    %492 = vmatmul.mubr.bf16.gmra.mrb[0].mxu0 %v454
    %v493 = vpop.f32.mrb[0].mxu0
    %v494 = vadd.f32 0.0, %v493
    %v495 = vpop.f32.mrb[0].mxu0
    %v496 = vpop.f32.mrb[0].mxu0
    %v497 = vpop.f32.mrb[0].mxu0
    %498 = vdwg.mxu0
    %499 = vrot.lane.b32.xlu0 %v229, 96
    %v500 = vpop.permute.xlu0 %499
    %501 = vrot.lane.b32.xlu0 %v229, 32
    %v502 = vpop.permute.xlu0 %501
    %v504 = vsel %vm235, %v500, 0
    %v507 = vsel %vm235, %v502, 0
    %509 = vmatprep.subr.bf16.mxu0 0
    %510 = vmatpush1.bf16.xpose.msra.mxu0 %v507
    %511 = vmatprep.subr.bf16.mxu0 0
    %512 = vmatpush1.bf16.xpose.msra.mxu0 0
    %513 = vmatprep.subr.bf16.mxu0 0
    %514 = vmatpush1.bf16.xpose.msra.mxu0 0
    %515 = vmatprep.subr.bf16.mxu0 0
    %516 = vmatpush1.bf16.xpose.msra.mxu0 0
    %517 = vmatprep.subr.bf16.mxu0 0
    %518 = vmatpush1.bf16.xpose.msra.mxu0 0
    %519 = vmatprep.subr.bf16.mxu0 0
    %520 = vmatpush1.bf16.xpose.msra.mxu0 0
    %521 = vmatprep.subr.bf16.mxu0 0
    %522 = vmatpush1.bf16.xpose.msra.mxu0 0
    %523 = vmatprep.subr.bf16.mxu0 0
    %524 = vmatpush1.bf16.xpose.msra.mxu0 0
    %525 = vmatprep.subr.bf16.mxu0 0
    %526 = vmatpush1.bf16.xpose.msra.mxu0 0
    %527 = vmatprep.subr.bf16.mxu0 0
    %528 = vmatpush1.bf16.xpose.msra.mxu0 0
    %529 = vmatprep.subr.bf16.mxu0 0
    %530 = vmatpush1.bf16.xpose.msra.mxu0 0
    %531 = vmatprep.subr.bf16.mxu0 0
    %532 = vmatpush1.bf16.xpose.msra.mxu0 0
    %533 = vmatprep.subr.bf16.mxu0 0
    %534 = vmatpush1.bf16.xpose.msra.mxu0 0
    %535 = vmatprep.subr.bf16.mxu0 0
    %536 = vmatpush1.bf16.xpose.msra.mxu0 0
    %537 = vmatprep.subr.bf16.mxu0 0
    %538 = vmatpush1.bf16.xpose.msra.mxu0 0
    %539 = vmatprep.subr.bf16.mxu0 0
    %540 = vmatpush1.bf16.xpose.msra.mxu0 0
    %541 = vmatprep.mubr.bf16.mxu0 0
    %542 = vmatmul.mubr.bf16.gmra.mrb[0].mxu0 %v504
    %v543 = vpop.f32.mrb[0].mxu0
    %v544 = vadd.f32 0.0, %v543
    %v545 = vpop.f32.mrb[0].mxu0
    %v546 = vpop.f32.mrb[0].mxu0
    %v547 = vpop.f32.mrb[0].mxu0
    %548 = vdwg.mxu0
    %v549 = vsel %vm331, %v494, -inf
    %550 = vmax.xlane.f32.xlu0 %v549
    %v551 = vpop.xlane.xlu0 %550
    %v552 = vsel %vm331, %v544, -inf
    %553 = vmax.xlane.f32.xlu0 %v552
    %v554 = vpop.xlane.xlu0 %553
    %v555 = vsub.f32 %v494, %v551
    %v556 = vsub.f32 %v544, %v554
    %v557 = vmul.f32 %v555, 1.442695
    %v558 = vpow.pop %v557
    %v559 = vmul.f32 %v556, 1.442695
    %v560 = vpow.pop %v559
    %v561 = vsel %vm331, %v558, 0.0
    %562 = vadd.xlane.f32.xlu0 %v561
    %v563 = vpop.xlane.xlu0 %562
    %v564 = vsel %vm331, %v560, 0.0
    %565 = vadd.xlane.f32.xlu0 %v564
    %v566 = vpop.xlane.xlu0 %565
    %v567 = vrcp.pop %v563
    %v568 = vmul.f32 %v558, %v567
    %v569 = vrcp.pop %v566
    %v570 = vmul.f32 %v560, %v569
    %v571 = vpack.c.bf16 %v568, %v568
    %v572 = vpack.c.bf16 %v570, %v570
    %574 = vrot.lane.b32.xlu0 %v230, 96
    %v575 = vpop.permute.xlu0 %574
    %v577 = vsel %vm331, %v571, 0
    %v580 = vsel %vm359, %v575, 0
    %582 = vmatprep.subr.bf16.mxu0 0
    %583 = vmatpush1.bf16.msra.mxu0 %v580
    %584 = vmatprep.subr.bf16.mxu0 0
    %585 = vmatpush1.bf16.msra.mxu0 0
    %586 = vmatprep.subr.bf16.mxu0 0
    %587 = vmatpush1.bf16.msra.mxu0 0
    %588 = vmatprep.subr.bf16.mxu0 0
    %589 = vmatpush1.bf16.msra.mxu0 0
    %590 = vmatprep.subr.bf16.mxu0 0
    %591 = vmatpush1.bf16.msra.mxu0 0
    %592 = vmatprep.subr.bf16.mxu0 0
    %593 = vmatpush1.bf16.msra.mxu0 0
    %594 = vmatprep.subr.bf16.mxu0 0
    %595 = vmatpush1.bf16.msra.mxu0 0
    %596 = vmatprep.subr.bf16.mxu0 0
    %597 = vmatpush1.bf16.msra.mxu0 0
    %598 = vmatprep.subr.bf16.mxu0 0
    %599 = vmatpush1.bf16.msra.mxu0 0
    %600 = vmatprep.subr.bf16.mxu0 0
    %601 = vmatpush1.bf16.msra.mxu0 0
    %602 = vmatprep.subr.bf16.mxu0 0
    %603 = vmatpush1.bf16.msra.mxu0 0
    %604 = vmatprep.subr.bf16.mxu0 0
    %605 = vmatpush1.bf16.msra.mxu0 0
    %606 = vmatprep.subr.bf16.mxu0 0
    %607 = vmatpush1.bf16.msra.mxu0 0
    %608 = vmatprep.subr.bf16.mxu0 0
    %609 = vmatpush1.bf16.msra.mxu0 0
    %610 = vmatprep.subr.bf16.mxu0 0
    %611 = vmatpush1.bf16.msra.mxu0 0
    %612 = vmatprep.subr.bf16.mxu0 0
    %613 = vmatpush1.bf16.msra.mxu0 0
    %614 = vmatprep.mubr.bf16.mxu0 0
    %615 = vmatmul.mubr.bf16.gmra.mrb[0].mxu0 %v577
    %v616 = vpop.f32.mrb[0].mxu0
    %v617 = vadd.f32 0.0, %v616
    %v618 = vpop.f32.mrb[0].mxu0
    %v619 = vpop.f32.mrb[0].mxu0
    %v620 = vpop.f32.mrb[0].mxu0
    %621 = vdwg.mxu0
    %623 = vrot.lane.b32.xlu0 %v231, 96
    %v624 = vpop.permute.xlu0 %623
    %v626 = vsel %vm331, %v572, 0
    %v629 = vsel %vm359, %v624, 0
    %631 = vmatprep.subr.bf16.mxu0 0
    %632 = vmatpush1.bf16.msra.mxu0 %v629
    %633 = vmatprep.subr.bf16.mxu0 0
    %634 = vmatpush1.bf16.msra.mxu0 0
    %635 = vmatprep.subr.bf16.mxu0 0
    %636 = vmatpush1.bf16.msra.mxu0 0
    %637 = vmatprep.subr.bf16.mxu0 0
    %638 = vmatpush1.bf16.msra.mxu0 0
    %639 = vmatprep.subr.bf16.mxu0 0
    %640 = vmatpush1.bf16.msra.mxu0 0
    %641 = vmatprep.subr.bf16.mxu0 0
    %642 = vmatpush1.bf16.msra.mxu0 0
    %643 = vmatprep.subr.bf16.mxu0 0
    %644 = vmatpush1.bf16.msra.mxu0 0
    %645 = vmatprep.subr.bf16.mxu0 0
    %646 = vmatpush1.bf16.msra.mxu0 0
    %647 = vmatprep.subr.bf16.mxu0 0
    %648 = vmatpush1.bf16.msra.mxu0 0
    %649 = vmatprep.subr.bf16.mxu0 0
    %650 = vmatpush1.bf16.msra.mxu0 0
    %651 = vmatprep.subr.bf16.mxu0 0
    %652 = vmatpush1.bf16.msra.mxu0 0
    %653 = vmatprep.subr.bf16.mxu0 0
    %654 = vmatpush1.bf16.msra.mxu0 0
    %655 = vmatprep.subr.bf16.mxu0 0
    %656 = vmatpush1.bf16.msra.mxu0 0
    %657 = vmatprep.subr.bf16.mxu0 0
    %658 = vmatpush1.bf16.msra.mxu0 0
    %659 = vmatprep.subr.bf16.mxu0 0
    %660 = vmatpush1.bf16.msra.mxu0 0
    %661 = vmatprep.subr.bf16.mxu0 0
    %662 = vmatpush1.bf16.msra.mxu0 0
    %663 = vmatprep.mubr.bf16.mxu0 0
    %664 = vmatmul.mubr.bf16.gmra.mrb[0].mxu0 %v626
    %v665 = vpop.f32.mrb[0].mxu0
    %v666 = vadd.f32 0.0, %v665
    %v667 = vpop.f32.mrb[0].mxu0
    %v668 = vpop.f32.mrb[0].mxu0
    %v669 = vpop.f32.mrb[0].mxu0
    %670 = vdwg.mxu0
    %673 = vrot.lane.b32.xlu0 %v617, 32
    %v674 = vpop.permute.xlu0 %673
    %675 = vrot.lane.b32.xlu0 %v666, 32
    %v676 = vpop.permute.xlu0 %675
    %v679 = vsel %vm235, %v398, %v674
    %v680 = vsel %vm235, %v444, %v676
    %v681 = vpack.c.bf16 %v680, %v679
    %v682 = vlaneseq
    %v683 = vshrl.u32 %v682, 7
    %v684 = vsub.s32 0, %v683
    %v685 = vrot.slane %v227, %v684
    %v694 = vunpack.c.l.b16 %v218
    %v695 = vunpack.c.l.b16 %v219
    %v696 = vunpack.c.l.b16 %v220
    %v697 = vunpack.c.l.b16 %v221
    %v698 = vunpack.c.l.b16 %v222
    %v699 = vunpack.c.l.b16 %v223
    %v700 = vunpack.c.l.b16 %v224
    %v701 = vunpack.c.l.b16 %v225
    %v702 = vpack.c.b16 %v695, %v694
    %v703 = vpack.c.b16 %v697, %v696
    %v704 = vpack.c.b16 %v699, %v698
    %v705 = vpack.c.b16 %v701, %v700
    %v711 = vsel %vm171, %v681, 0
    %713 = vmatprep.subr.bf16.mxu0 0
    %714 = vmatpush1.bf16.msra.mxu0 %v702
    %715 = vmatprep.subr.bf16.mxu0 0
    %716 = vmatpush1.bf16.msra.mxu0 %v703
    %717 = vmatprep.subr.bf16.mxu0 0
    %718 = vmatpush1.bf16.msra.mxu0 %v704
    %719 = vmatprep.subr.bf16.mxu0 0
    %720 = vmatpush1.bf16.msra.mxu0 %v705
    %721 = vmatprep.subr.bf16.mxu0 0
    %722 = vmatpush1.bf16.msra.mxu0 0
    %723 = vmatprep.subr.bf16.mxu0 0
    %724 = vmatpush1.bf16.msra.mxu0 0
    %725 = vmatprep.subr.bf16.mxu0 0
    %726 = vmatpush1.bf16.msra.mxu0 0
    %727 = vmatprep.subr.bf16.mxu0 0
    %728 = vmatpush1.bf16.msra.mxu0 0
    %729 = vmatprep.subr.bf16.mxu0 0
    %730 = vmatpush1.bf16.msra.mxu0 0
    %731 = vmatprep.subr.bf16.mxu0 0
    %732 = vmatpush1.bf16.msra.mxu0 0
    %733 = vmatprep.subr.bf16.mxu0 0
    %734 = vmatpush1.bf16.msra.mxu0 0
    %735 = vmatprep.subr.bf16.mxu0 0
    %736 = vmatpush1.bf16.msra.mxu0 0
    %737 = vmatprep.subr.bf16.mxu0 0
    %738 = vmatpush1.bf16.msra.mxu0 0
    %739 = vmatprep.subr.bf16.mxu0 0
    %740 = vmatpush1.bf16.msra.mxu0 0
    %741 = vmatprep.subr.bf16.mxu0 0
    %742 = vmatpush1.bf16.msra.mxu0 0
    %743 = vmatprep.subr.bf16.mxu0 0
    %744 = vmatpush1.bf16.msra.mxu0 0
    %745 = vmatprep.mubr.bf16.mxu0 0
    %746 = vmatmul.mubr.bf16.gmra.mrb[0].mxu0 %v711
    %v747 = vpop.f32.mrb[0].mxu0
    %v748 = vadd.f32 %v685, %v747
    %v749 = vpop.f32.mrb[0].mxu0
    %v750 = vpop.f32.mrb[0].mxu0
    %v751 = vadd.f32 %v685, %v750
    %v752 = vpop.f32.mrb[0].mxu0
    %753 = vdwg.mxu0
    %754 = vst.msk [vmem:[#allocation2] sm:$0xff] %vm171, %v748
    %755 = vst.msk [vmem:[#allocation2 + $0x8] sm:$0xff] %vm171, %v751
    // Predicated region
    $region14: #{multi_head_attention.1} parent=1 // pred_check
      _
    $region15: #{multi_head_attention.1} parent=1 // pred_check_branch
      %757 = sbr.rel (0) target = $region17
    $region16: #{multi_head_attention.1} parent=1 // pred_region
      %s759 = ssub.s32 256, 256
      %760 = vsyncadd [#allocation3], %s759
      %s761 = sshll.u32 [#allocation2], 4
      %s762 = int_to_ptr.vmem [resolvable:$true] %s761
      %767 = dma.vmem_to_hbm [thread:$0]  %s762, 256, %s3, [#allocation3], 128, 128, 8
    $region17: #{multi_head_attention.1} parent=1 // pred_fallthru
      _
    // Predicated region
    $region18: #{multi_head_attention.1} parent=1 // pred_check
      _
    $region19: #{multi_head_attention.1} parent=1 // pred_check_branch
      %769 = sbr.rel (0) target = $region21
    $region20: #{multi_head_attention.1} parent=1 // pred_region
      %770 = dma.done [#allocation3], 256
    $region21: #{multi_head_attention.1} parent=1 // pred_fallthru
      _
    %771 = vsyncpa [#allocation3], 1

</llo_original>
